<compile_context>
chip_gen: v7x
topology: tpu7x:2x2x1
jax: 0.10.0
libtpu: 0.0.40
codegen_flags: <defaults>
</compile_context>

<pallas_src>
import functools

import numpy as np
import jax
import jax.numpy as jnp
from jax.experimental import pallas as pl
from jax.experimental.pallas import tpu as pltpu

OUT_DIM = 6       # affine parameters
OUT_PAD = 128     # lane-aligned output width
HID_PAD = 128     # lane-aligned hidden width
MAX_TK = 4096     # max feature (K) tile


def _round_up(x, m):
    return ((x + m - 1) // m) * m


def _localization_kernel(x_ref, w1_ref, b1_ref, w2_ref, bias2_ref, out_ref, h_acc,
                         *, TK, F, KBLOCKS, need_k_mask):
    """Fused localization forward for one (batch-tile, K-tile) grid step.

    x_ref:     [TB, TK]            f32 flattened input tile (cast to bf16 here)
    w1_ref:    [F_pad, HID_PAD]    bf16 feature-extractor weight (VMEM-resident)
    b1_ref:    [1, HID_PAD]        f32 feature-extractor bias (padded)
    w2_ref:    [HID_PAD, OUT_PAD]  bf16 affine_param weight (padded, resident)
    bias2_ref: [1, OUT_PAD]        f32 affine bias + identity (folded, padded)
    out_ref:   [TB, OUT_PAD]       f32 theta + identity (padded)
    h_acc:     [TB, HID_PAD]       f32 scratch accumulator for the hidden layer
    """
    k = pl.program_id(1)

    @pl.when(k == 0)
    def _():
        h_acc[...] = jnp.zeros_like(h_acc)

    xt = x_ref[...]
    if need_k_mask:
        # Last K tile may read past F: zero the out-of-range columns so the
        # undefined pad contents never reach the accumulator.
        col = jax.lax.broadcasted_iota(jnp.int32, xt.shape, 1) + k * TK
        xt = jnp.where(col < F, xt, 0.0)
    xt = xt.astype(jnp.bfloat16)

    if KBLOCKS == 1:
        w1t = w1_ref[...]
    else:
        k_start = pl.multiple_of(k * TK, TK)
        w1t = w1_ref[pl.ds(k_start, TK), :]

    # self.model matmul (partial over the K tile), f32 accumulation on the MXU.
    h_acc[...] += jnp.dot(xt, w1t, preferred_element_type=jnp.float32)

    @pl.when(k == KBLOCKS - 1)
    def _():
        # bias + ReLU of self.model, then affine_param + (bias + identity).
        h = jnp.maximum(h_acc[...] + b1_ref[...], 0.0).astype(jnp.bfloat16)
        theta = jnp.dot(h, w2_ref[...], preferred_element_type=jnp.float32)
        out_ref[...] = theta + bias2_ref[...]


def prepare_localization_params(w1, b1, w2, b2, identity, max_tk=MAX_TK):
    """One-time parameter preparation (hoisted out of the forward path).

    w1: [F, H]  (in, out layout == PyTorch weight.T),  b1: [H]
    w2: [H, 6]  (in, out layout),                      b2: [6]
    identity: [6]
    """
    F, H = w1.shape
    assert H <= HID_PAD, "hidden width must fit the 128-lane pad"
    max_tk = _round_up(max(max_tk, 128), 128)

    if F <= max_tk:
        TK, F_pad, KBLOCKS = F, F, 1
    else:
        TK = max_tk
        F_pad = _round_up(F, TK)
        KBLOCKS = F_pad // TK

    # w1 is kept fully VMEM-resident; make sure that is sane.
    assert F_pad * HID_PAD * 2 <= (24 << 20), "w1 too large to keep VMEM-resident"

    w1_p = jnp.zeros((F_pad, HID_PAD), jnp.bfloat16)
    w1_p = w1_p.at[:F, :H].set(w1.astype(jnp.bfloat16))
    b1_p = jnp.zeros((1, HID_PAD), jnp.float32).at[0, :H].set(b1.astype(jnp.float32))
    w2_p = jnp.zeros((HID_PAD, OUT_PAD), jnp.bfloat16).at[:H, :OUT_DIM].set(
        w2.astype(jnp.bfloat16))
    # Fold affine bias and the registered identity buffer into one vector.
    bias2_p = jnp.zeros((1, OUT_PAD), jnp.float32).at[0, :OUT_DIM].set(
        b2.astype(jnp.float32) + identity.astype(jnp.float32))

    return dict(w1=w1_p, b1=b1_p, w2=w2_p, bias2=bias2_p,
                F=F, F_pad=F_pad, TK=TK, KBLOCKS=KBLOCKS)


def localization_forward(x, params, tb=512):
    """x: [B, C, H, W] -> [B, 6] (theta + identity)."""
    B = x.shape[0]
    F, F_pad = params["F"], params["F_pad"]
    TK, KBLOCKS = params["TK"], params["KBLOCKS"]

    x_flat = x.reshape(B, -1)                  # no cast / pad here: done in-kernel
    assert x_flat.shape[1] == F

    # Batch tile: multiple of 8 sublanes, capped at `tb`; split into >=2 blocks
    # when possible so both v7x TensorCores get work on the "parallel" axis.
    B8 = _round_up(B, 8)
    TB = max(8, min(tb, B8))
    if B8 // TB < 2 and B8 >= 16:
        TB = _round_up((B8 + 1) // 2, 8)
    Bp = _round_up(B, TB)

    grid = (Bp // TB, KBLOCKS)

    kernel = functools.partial(_localization_kernel, TK=TK, F=F,
                               KBLOCKS=KBLOCKS, need_k_mask=(F_pad != F))

    # Scoped-VMEM budget: x double-buffer + resident w1 + out + accumulator,
    # with headroom; capped at 48 MiB (fits v7x's 64 MiB physical VMEM).
    itemsize = jnp.dtype(x_flat.dtype).itemsize
    est = (2 * TB * TK * itemsize
           + 2 * F_pad * HID_PAD * 2
           + 2 * TB * OUT_PAD * 4
           + TB * HID_PAD * 4
           + 2 * (HID_PAD * OUT_PAD * 2 + HID_PAD * 4 + OUT_PAD * 4))
    vmem_limit = int(min(max(2 * est, 32 << 20), 48 << 20))

    out_padded = pl.pallas_call(
        kernel,
        out_shape=jax.ShapeDtypeStruct((Bp, OUT_PAD), jnp.float32),
        grid_spec=pltpu.PrefetchScalarGridSpec(
            num_scalar_prefetch=0,
            grid=grid,
            in_specs=[
                pl.BlockSpec((TB, TK), lambda i, k: (i, k)),            # x (streamed)
                pl.BlockSpec((F_pad, HID_PAD), lambda i, k: (0, 0)),    # w1 (resident)
                pl.BlockSpec((1, HID_PAD), lambda i, k: (0, 0)),        # b1 (resident)
                pl.BlockSpec((HID_PAD, OUT_PAD), lambda i, k: (0, 0)),  # w2 (resident)
                pl.BlockSpec((1, OUT_PAD), lambda i, k: (0, 0)),        # b2+identity
            ],
            out_specs=pl.BlockSpec((TB, OUT_PAD), lambda i, k: (i, 0)),
            scratch_shapes=[pltpu.VMEM((TB, HID_PAD), jnp.float32)],
        ),
        compiler_params=pltpu.CompilerParams(
            dimension_semantics=("parallel", "arbitrary"),
            vmem_limit_bytes=vmem_limit),
    )(x_flat, params["w1"], params["b1"], params["w2"], params["bias2"])

    return out_padded[:B, :OUT_DIM]


def _reference_forward(x, w1, b1, w2, b2, identity):
    """Plain-JAX reference with matching bf16-input / f32-accum precision."""
    B = x.shape[0]
    xb = x.reshape(B, -1).astype(jnp.bfloat16)
    h = jnp.dot(xb, w1.astype(jnp.bfloat16), preferred_element_type=jnp.float32)
    h = jnp.maximum(h + b1.astype(jnp.float32), 0.0).astype(jnp.bfloat16)
    theta = jnp.dot(h, w2.astype(jnp.bfloat16), preferred_element_type=jnp.float32)
    return theta + b2.astype(jnp.float32) + identity.astype(jnp.float32)


def _run_case(key, B, C, Hs, Ws, HID, zero_affine, tb=512, max_tk=MAX_TK):
    F = C * Hs * Ws
    kx, kw1, kb1, kw2, kb2 = jax.random.split(key, 5)

    x = jax.random.normal(kx, (B, C, Hs, Ws), dtype=jnp.float32)

    bound1 = 1.0 / np.sqrt(F)
    w1 = jax.random.uniform(kw1, (F, HID), minval=-bound1, maxval=bound1,
                            dtype=jnp.float32)
    b1 = jax.random.uniform(kb1, (HID,), minval=-bound1, maxval=bound1,
                            dtype=jnp.float32)

    if zero_affine:
        # Module init: affine_param weight/bias are zeroed.
        w2 = jnp.zeros((HID, OUT_DIM), jnp.float32)
        b2 = jnp.zeros((OUT_DIM,), jnp.float32)
    else:
        # "Trained" affine_param to exercise the full fused path.
        w2 = 0.05 * jax.random.normal(kw2, (HID, OUT_DIM), dtype=jnp.float32)
        b2 = 0.05 * jax.random.normal(kb2, (OUT_DIM,), dtype=jnp.float32)

    identity = jnp.array([1.0, 0.0, 0.0, 0.0, 1.0, 0.0], dtype=jnp.float32)

    params = prepare_localization_params(w1, b1, w2, b2, identity, max_tk=max_tk)
    out = localization_forward(x, params, tb=tb)
    out = jax.block_until_ready(out)

    ref = _reference_forward(x, w1, b1, w2, b2, identity)
    assert out.shape == (B, OUT_DIM)
    np.testing.assert_allclose(np.asarray(out), np.asarray(ref),
                               rtol=2e-3, atol=2e-3)


if __name__ == "__main__":
    key = jax.random.PRNGKey(0)
    k1, k2, k3, k4 = jax.random.split(key, 4)

    # TODO(synk): the gradient hook (llr != 1) only affects backward; no forward equivalent needed.

    # 1) Module-init semantics (zero affine_param): small STN-like input.
    _run_case(k1, B=2, C=4, Hs=16, Ws=16, HID=32, zero_affine=True)

    # 2) Non-zero affine_param, tiny batch -> single batch tile, full fused path.
    _run_case(k2, B=2, C=4, Hs=16, Ws=16, HID=32, zero_affine=False)

    # 3) F > max_tk and B=48 -> multi-block K accumulation with resident-w1
    #    slicing and a >=2-block batch axis (v7x split path).
    _run_case(k3, B=48, C=4, Hs=32, Ws=32, HID=32, zero_affine=False, max_tk=1024)

    # 4) Ragged F (675, not a multiple of the K tile) and ragged batch ->
    #    exercises the in-kernel K mask and partial batch/K tiles.
    _run_case(k4, B=10, C=3, Hs=15, Ws=15, HID=20, zero_affine=False, max_tk=512)

    print("KERNEL_OK")
</pallas_src>

<mosaic_0001>
module attributes {stable_mosaic.version = 11 : i64} {
  func.func @_localization_kernel(%arg0: i32, %arg1: i32, %arg2: memref<8x1024xf32, #tpu.memory_space<vmem>>, %arg3: memref<1024x128xbf16, #tpu.memory_space<vmem>>, %arg4: memref<1x128xf32, #tpu.memory_space<vmem>>, %arg5: memref<128x128xbf16, #tpu.memory_space<vmem>>, %arg6: memref<1x128xf32, #tpu.memory_space<vmem>>, %arg7: memref<8x128xf32, #tpu.memory_space<vmem>>, %arg8: memref<8x128xf32, #tpu.memory_space<vmem>>) attributes {dimension_semantics = [#tpu.dimension_semantics<parallel>, #tpu.dimension_semantics<arbitrary>], iteration_bounds = array<i64: 1, 1>, scalar_prefetch = 0 : i64, scratch_operands = 1 : i64, tpu.core_type = #tpu.core_type<tc>, window_params = [{transform_indices = @transform_0, window_bounds = array<i64: 8, 1024>}, {pipeline_mode = #tpu.pipeline_mode<synchronous>, transform_indices = @transform_1, window_bounds = array<i64: 1024, 128>}, {pipeline_mode = #tpu.pipeline_mode<synchronous>, transform_indices = @transform_2, window_bounds = array<i64: 1, 128>}, {pipeline_mode = #tpu.pipeline_mode<synchronous>, transform_indices = @transform_3, window_bounds = array<i64: 128, 128>}, {pipeline_mode = #tpu.pipeline_mode<synchronous>, transform_indices = @transform_4, window_bounds = array<i64: 1, 128>}, {transform_indices = @transform_5, window_bounds = array<i64: 8, 128>}]} {
    %c0_i32 = arith.constant 0 : i32
    %0 = arith.cmpi eq, %arg1, %c0_i32 : i32
    %1 = arith.extui %0 : i1 to i32
    %c0_i32_0 = arith.constant 0 : i32
    %2 = arith.cmpi ne, %1, %c0_i32_0 : i32
    scf.if %2 {
      %cst_10 = arith.constant 0.000000e+00 : f32
      %13 = vector.broadcast %cst_10 : f32 to vector<8x128xf32>
      %c0_11 = arith.constant 0 : index
      %c0_12 = arith.constant 0 : index
      %14 = vector.load %arg8[%c0_11, %c0_12] : memref<8x128xf32, #tpu.memory_space<vmem>>, vector<8x128xf32>
      tpu.vector_store %arg8[%c0_11, %c0_12], %13 {strides = array<i32>} : memref<8x128xf32, #tpu.memory_space<vmem>>, vector<8x128xf32>,
    } else {
    }
    %c0 = arith.constant 0 : index
    %c0_1 = arith.constant 0 : index
    %3 = vector.load %arg2[%c0, %c0_1] : memref<8x1024xf32, #tpu.memory_space<vmem>>, vector<8x1024xf32>
    %4 = arith.truncf %3 : vector<8x1024xf32> to vector<8x1024xbf16>
    %c0_2 = arith.constant 0 : index
    %c0_3 = arith.constant 0 : index
    %5 = vector.load %arg3[%c0_2, %c0_3] : memref<1024x128xbf16, #tpu.memory_space<vmem>>, vector<1024x128xbf16>
    %c0_4 = arith.constant 0 : index
    %c0_5 = arith.constant 0 : index
    %6 = vector.load %arg8[%c0_4, %c0_5] : memref<8x128xf32, #tpu.memory_space<vmem>>, vector<8x128xf32>
    %cst = arith.constant dense<0.000000e+00> : vector<8x128xf32>
    %7 = tpu.matmul %4, %5, %cst {dimension_numbers = #tpu.dot_dimension_numbers<[1], [0], [0], [1], [0, 0, 1, 1], [], []>} : vector<8x1024xbf16>, vector<1024x128xbf16>, vector<8x128xf32> -> vector<8x128xf32>
    %8 = arith.addf %6, %7 : vector<8x128xf32>
    %c0_6 = arith.constant 0 : index
    %c0_7 = arith.constant 0 : index
    %9 = vector.load %arg8[%c0_6, %c0_7] : memref<8x128xf32, #tpu.memory_space<vmem>>, vector<8x128xf32>
    tpu.vector_store %arg8[%c0_6, %c0_7], %8 {strides = array<i32>} : memref<8x128xf32, #tpu.memory_space<vmem>>, vector<8x128xf32>,
    %c0_i32_8 = arith.constant 0 : i32
    %10 = arith.cmpi eq, %arg1, %c0_i32_8 : i32
    %11 = arith.extui %10 : i1 to i32
    %c0_i32_9 = arith.constant 0 : i32
    %12 = arith.cmpi ne, %11, %c0_i32_9 : i32
    scf.if %12 {
      %c0_10 = arith.constant 0 : index
      %c0_11 = arith.constant 0 : index
      %13 = vector.load %arg8[%c0_10, %c0_11] : memref<8x128xf32, #tpu.memory_space<vmem>>, vector<8x128xf32>
      %c0_12 = arith.constant 0 : index
      %c0_13 = arith.constant 0 : index
      %14 = vector.load %arg4[%c0_12, %c0_13] : memref<1x128xf32, #tpu.memory_space<vmem>>, vector<1x128xf32>
      %15 = vector.broadcast %14 : vector<1x128xf32> to vector<8x128xf32>
      %16 = arith.addf %13, %15 : vector<8x128xf32>
      %cst_14 = arith.constant 0.000000e+00 : f32
      %17 = vector.broadcast %cst_14 : f32 to vector<8x128xf32>
      %18 = arith.maximumf %16, %17 : vector<8x128xf32>
      %19 = arith.truncf %18 : vector<8x128xf32> to vector<8x128xbf16>
      %c0_15 = arith.constant 0 : index
      %c0_16 = arith.constant 0 : index
      %20 = vector.load %arg5[%c0_15, %c0_16] : memref<128x128xbf16, #tpu.memory_space<vmem>>, vector<128x128xbf16>
      %cst_17 = arith.constant dense<0.000000e+00> : vector<8x128xf32>
      %21 = tpu.matmul %19, %20, %cst_17 {dimension_numbers = #tpu.dot_dimension_numbers<[1], [0], [0], [1], [0, 0, 1, 1], [], []>} : vector<8x128xbf16>, vector<128x128xbf16>, vector<8x128xf32> -> vector<8x128xf32>
      %c0_18 = arith.constant 0 : index
      %c0_19 = arith.constant 0 : index
      %22 = vector.load %arg6[%c0_18, %c0_19] : memref<1x128xf32, #tpu.memory_space<vmem>>, vector<1x128xf32>
      %23 = vector.broadcast %22 : vector<1x128xf32> to vector<8x128xf32>
      %24 = arith.addf %21, %23 : vector<8x128xf32>
      %c0_20 = arith.constant 0 : index
      %c0_21 = arith.constant 0 : index
      %25 = vector.load %arg7[%c0_20, %c0_21] : memref<8x128xf32, #tpu.memory_space<vmem>>, vector<8x128xf32>
      tpu.vector_store %arg7[%c0_20, %c0_21], %24 {strides = array<i32>} : memref<8x128xf32, #tpu.memory_space<vmem>>, vector<8x128xf32>,
    } else {
    }
    return
  }
  func.func @transform_0(%arg0: i32, %arg1: i32) -> (i32, i32) {
    %c0_i32 = arith.constant 0 : i32
    return %arg0, %arg1 : i32, i32
  }
  func.func @transform_1(%arg0: i32, %arg1: i32) -> (i32, i32) {
    %c0_i32 = arith.constant 0 : i32
    %c0_i32_0 = arith.constant 0 : i32
    %c0_i32_1 = arith.constant 0 : i32
    return %c0_i32, %c0_i32_0 : i32, i32
  }
  func.func @transform_2(%arg0: i32, %arg1: i32) -> (i32, i32) {
    %c0_i32 = arith.constant 0 : i32
    %c0_i32_0 = arith.constant 0 : i32
    %c0_i32_1 = arith.constant 0 : i32
    return %c0_i32, %c0_i32_0 : i32, i32
  }
  func.func @transform_3(%arg0: i32, %arg1: i32) -> (i32, i32) {
    %c0_i32 = arith.constant 0 : i32
    %c0_i32_0 = arith.constant 0 : i32
    %c0_i32_1 = arith.constant 0 : i32
    return %c0_i32, %c0_i32_0 : i32, i32
  }
  func.func @transform_4(%arg0: i32, %arg1: i32) -> (i32, i32) {
    %c0_i32 = arith.constant 0 : i32
    %c0_i32_0 = arith.constant 0 : i32
    %c0_i32_1 = arith.constant 0 : i32
    return %c0_i32, %c0_i32_0 : i32, i32
  }
  func.func @transform_5(%arg0: i32, %arg1: i32) -> (i32, i32) {
    %c0_i32 = arith.constant 0 : i32
    %c0_i32_0 = arith.constant 0 : i32
    return %arg0, %c0_i32 : i32, i32
  }
}

</mosaic_0001>

<llo_original>
// kernel: tpu_custom_call.1
$region0: #{tpu_custom_call.1}
  #allocation0 [shape = 'u32[]', space=smem, size = 0x4, offset = 0x4, fixed_abs, tag = 'smem constant byte address 0x4 - core index']
  #allocation1 [shape = 'u32[144,128]{1,0:T(1,128)}', space=vmem, size = 0x12000, scoped, tag = 'internal scratch']
  #allocation2 [shape = 'f32[8,128]{1,0:T(8,128)}', space=vmem, size = 0x1000, scoped, tag = 'scratch operand']
  %s0 = inlined_call_operand.hbm [shape: f32[2,1024], index: 0, kind: input, shape index: {}]
  %s1 = inlined_call_operand.hbm [shape: bf16[1024,128], index: 1, kind: input, shape index: {}]
  %s2 = inlined_call_operand.vmem [shape: f32[1,128], index: 2, kind: input, shape index: {}]
  %s3 = inlined_call_operand.hbm [shape: bf16[128,128], index: 3, kind: input, shape index: {}]
  %s4 = inlined_call_operand.vmem [shape: f32[1,128], index: 4, kind: input, shape index: {}]
  %s5 = inlined_call_operand.hbm [shape: f32[8,128], index: 5, kind: output, shape index: {}]
  %s6 = sld [smem:[#allocation0]]
  $region50: #{tpu_custom_call.1} parent=0
    _
  %s8 = ssub.s32 1, %s6
  %s9 = scalar_select 0, %s8, %s6
  $region1: #{tpu_custom_call.1} parent=0
    #allocation3 [shape = 'u8[32768]{0}', space=vmem, size = 0x8000, scoped, tag = 'input window, operand 0, single buffered']
    #allocation4 [shape = 's32[1]{0}', space=sflag, size = 0x4, scoped, tag = 'scoped memory for tpu_custom_call.1']
    #allocation5 [shape = 's32[1]{0}', space=sflag, size = 0x4, scoped, tag = 'scoped memory for tpu_custom_call.1']
    #allocation6 [shape = 'u8[262144]{0}', space=vmem, size = 0x40000, scoped, tag = 'input window, operand 1, single buffered']
    #allocation7 [shape = 's32[1]{0}', space=sflag, size = 0x4, scoped, tag = 'scoped memory for tpu_custom_call.1']
    #allocation8 [shape = 'u8[32768]{0}', space=vmem, size = 0x8000, scoped, tag = 'input window, operand 3, single buffered']
    #allocation9 [shape = 'u8[4096]{0}', space=vmem, size = 0x1000, scoped, tag = 'output window, operand 0, single buffered']
    %10 = vsyncpa [#allocation4], 0
    %11 = vsyncpa [#allocation7], 0
    %12 = vsyncpa [#allocation5], 0
    // Predicated region
    $region2: #{tpu_custom_call.1} parent=1 // pred_check
      _
    $region3: #{tpu_custom_call.1} parent=1 // pred_check_branch
      %14 = sbr.rel (0) target = $region5
    $region4: #{tpu_custom_call.1} parent=1 // pred_region
      %s16 = ssub.s32 1024, 256
      %17 = vsyncadd [#allocation4], %s16
      %s18 = sshll.u32 [#allocation3], 4
      %s19 = int_to_ptr.vmem [resolvable:$true] %s18
      %24 = dma.hbm_to_vmem [thread:$0]  %s0, 256, %s19, [#allocation4], 256, 256, 16
    $region5: #{tpu_custom_call.1} parent=1 // pred_fallthru
      _
    // Predicated region
    $region6: #{tpu_custom_call.1} parent=1 // pred_check
      _
    $region7: #{tpu_custom_call.1} parent=1 // pred_check_branch
      %26 = sbr.rel (0) target = $region9
    $region8: #{tpu_custom_call.1} parent=1 // pred_region
      %s28 = ssub.s32 8192, 8192
      %29 = vsyncadd [#allocation7], %s28
      %s30 = sshll.u32 [#allocation6], 4
      %s31 = int_to_ptr.vmem [resolvable:$true] %s30
      %36 = dma.hbm_to_vmem [thread:$0]  %s1, 8192, %s31, [#allocation7], 64, 64, 4
    $region9: #{tpu_custom_call.1} parent=1 // pred_fallthru
      _
    // Predicated region
    $region10: #{tpu_custom_call.1} parent=1 // pred_check
      _
    $region11: #{tpu_custom_call.1} parent=1 // pred_check_branch
      %38 = sbr.rel (0) target = $region13
    $region12: #{tpu_custom_call.1} parent=1 // pred_region
      _
    $region13: #{tpu_custom_call.1} parent=1 // pred_fallthru
      _
    // Predicated region
    $region14: #{tpu_custom_call.1} parent=1 // pred_check
      _
    $region15: #{tpu_custom_call.1} parent=1 // pred_check_branch
      %40 = sbr.rel (0) target = $region17
    $region16: #{tpu_custom_call.1} parent=1 // pred_region
      %s42 = ssub.s32 1024, 1024
      %43 = vsyncadd [#allocation7], %s42
      %s44 = sshll.u32 [#allocation8], 4
      %s45 = int_to_ptr.vmem [resolvable:$true] %s44
      %50 = dma.hbm_to_vmem [thread:$0]  %s3, 1024, %s45, [#allocation7], 64, 64, 4
    $region17: #{tpu_custom_call.1} parent=1 // pred_fallthru
      _
    // Predicated region
    $region18: #{tpu_custom_call.1} parent=1 // pred_check
      _
    $region19: #{tpu_custom_call.1} parent=1 // pred_check_branch
      %52 = sbr.rel (0) target = $region21
    $region20: #{tpu_custom_call.1} parent=1 // pred_region
      _
    $region21: #{tpu_custom_call.1} parent=1 // pred_fallthru
      _
    // Predicated region
    $region22: #{tpu_custom_call.1} parent=1 // pred_check
      _
    $region23: #{tpu_custom_call.1} parent=1 // pred_check_branch
      %54 = sbr.rel (0) target = $region25
    $region24: #{tpu_custom_call.1} parent=1 // pred_region
      %55 = dma.done [#allocation4], 1024
    $region25: #{tpu_custom_call.1} parent=1 // pred_fallthru
      _
    // Predicated region
    $region26: #{tpu_custom_call.1} parent=1 // pred_check
      _
    $region27: #{tpu_custom_call.1} parent=1 // pred_check_branch
      %57 = sbr.rel (0) target = $region29
    $region28: #{tpu_custom_call.1} parent=1 // pred_region
      %58 = dma.done [#allocation7], 8192
    $region29: #{tpu_custom_call.1} parent=1 // pred_fallthru
      _
    // Predicated region
    $region30: #{tpu_custom_call.1} parent=1 // pred_check
      _
    $region31: #{tpu_custom_call.1} parent=1 // pred_check_branch
      %60 = sbr.rel (0) target = $region33
    $region32: #{tpu_custom_call.1} parent=1 // pred_region
      %61 = dma.done [#allocation7], 1024
    $region33: #{tpu_custom_call.1} parent=1 // pred_fallthru
      _
    %p63 = scmp.eq.s32.totalorder 0, 0
    // Predicated region
    $region34: #{tpu_custom_call.1} parent=1 // pred_check
      %p64 = pneg %p63
    $region35: #{tpu_custom_call.1} parent=1 // pred_check_branch
      %66 = sbr.rel (%p64) target = $region37
    $region36: #{tpu_custom_call.1} parent=1 // pred_region
      %67 = vst [vmem:[#allocation2] sm:$0xff] 0.0
    $region37: #{tpu_custom_call.1} parent=1 // pred_fallthru
      _
    %v68 = vld [vmem:[#allocation3] sm:$0xff]
    %v69 = vld [vmem:[#allocation3 + $0x8] sm:$0xff]
    %v70 = vld [vmem:[#allocation3 + $0x10] sm:$0xff]
    %v71 = vld [vmem:[#allocation3 + $0x18] sm:$0xff]
    %v72 = vld [vmem:[#allocation3 + $0x20] sm:$0xff]
    %v73 = vld [vmem:[#allocation3 + $0x28] sm:$0xff]
    %v74 = vld [vmem:[#allocation3 + $0x30] sm:$0xff]
    %v75 = vld [vmem:[#allocation3 + $0x38] sm:$0xff]
    %v84 = vcombine.low %v68, %v70
    %v85 = vcombine.high %v68, %v70
    %v86 = vcombine.low %v72, %v74
    %v87 = vcombine.high %v72, %v74
    %v89 = vunpack.c.l.s4 1983009808
    %v90 = vunpack.c.0.s8 %v89
    %v91 = vlaneseq
    %v92 = vshrl.u32 %v91, 7
    %v93 = vsub.s32 %v90, %v92
    %v94 = vrot.slane %v84, %v93
    %v96 = vunpack.c.l.s4 1983009808
    %v97 = vunpack.c.0.s8 %v96
    %v98 = vlaneseq
    %v99 = vshrl.u32 %v98, 7
    %v100 = vsub.s32 %v97, %v99
    %v101 = vrot.slane %v85, %v100
    %v103 = vunpack.c.l.s4 1983009808
    %v104 = vunpack.c.0.s8 %v103
    %v105 = vlaneseq
    %v106 = vshrl.u32 %v105, 7
    %v107 = vsub.s32 %v104, %v106
    %v108 = vrot.slane %v86, %v107
    %v110 = vunpack.c.l.s4 1983009808
    %v111 = vunpack.c.0.s8 %v110
    %v112 = vlaneseq
    %v113 = vshrl.u32 %v112, 7
    %v114 = vsub.s32 %v111, %v113
    %v115 = vrot.slane %v87, %v114
    %v116 = vcombine.low %v94, %v108
    %v117 = vcombine.high %v94, %v108
    %v118 = vcombine.low %v101, %v115
    %v119 = vcombine.high %v101, %v115
    %v120 = vcombine.low %v69, %v71
    %v121 = vcombine.high %v69, %v71
    %v122 = vcombine.low %v73, %v75
    %v123 = vcombine.high %v73, %v75
    %v125 = vunpack.c.l.s4 1983009808
    %v126 = vunpack.c.0.s8 %v125
    %v127 = vlaneseq
    %v128 = vshrl.u32 %v127, 7
    %v129 = vsub.s32 %v126, %v128
    %v130 = vrot.slane %v120, %v129
    %v132 = vunpack.c.l.s4 1983009808
    %v133 = vunpack.c.0.s8 %v132
    %v134 = vlaneseq
    %v135 = vshrl.u32 %v134, 7
    %v136 = vsub.s32 %v133, %v135
    %v137 = vrot.slane %v121, %v136
    %v139 = vunpack.c.l.s4 1983009808
    %v140 = vunpack.c.0.s8 %v139
    %v141 = vlaneseq
    %v142 = vshrl.u32 %v141, 7
    %v143 = vsub.s32 %v140, %v142
    %v144 = vrot.slane %v122, %v143
    %v146 = vunpack.c.l.s4 1983009808
    %v147 = vunpack.c.0.s8 %v146
    %v148 = vlaneseq
    %v149 = vshrl.u32 %v148, 7
    %v150 = vsub.s32 %v147, %v149
    %v151 = vrot.slane %v123, %v150
    %v152 = vcombine.low %v130, %v144
    %v153 = vcombine.high %v130, %v144
    %v154 = vcombine.low %v137, %v151
    %v155 = vcombine.high %v137, %v151
    %v164 = vpack.c.bf16 %v116, %v116
    %v165 = vpack.c.bf16 %v117, %v117
    %v166 = vpack.c.bf16 %v118, %v118
    %v167 = vpack.c.bf16 %v119, %v119
    %v168 = vpack.c.bf16 %v152, %v152
    %v169 = vpack.c.bf16 %v153, %v153
    %v170 = vpack.c.bf16 %v154, %v154
    %v171 = vpack.c.bf16 %v155, %v155
    %v172 = vld [vmem:[#allocation6] sm:$0xf]
    %v173 = vld [vmem:[#allocation6 + $0x4] sm:$0xf]
    %v174 = vld [vmem:[#allocation6 + $0x8] sm:$0xf]
    %v175 = vld [vmem:[#allocation6 + $0xc] sm:$0xf]
    %v176 = vld [vmem:[#allocation6 + $0x10] sm:$0xf]
    %v177 = vld [vmem:[#allocation6 + $0x14] sm:$0xf]
    %v178 = vld [vmem:[#allocation6 + $0x18] sm:$0xf]
    %v179 = vld [vmem:[#allocation6 + $0x1c] sm:$0xf]
    %v180 = vld [vmem:[#allocation6 + $0x20] sm:$0xf]
    %v181 = vld [vmem:[#allocation6 + $0x24] sm:$0xf]
    %v182 = vld [vmem:[#allocation6 + $0x28] sm:$0xf]
    %v183 = vld [vmem:[#allocation6 + $0x2c] sm:$0xf]
    %v184 = vld [vmem:[#allocation6 + $0x30] sm:$0xf]
    %v185 = vld [vmem:[#allocation6 + $0x34] sm:$0xf]
    %v186 = vld [vmem:[#allocation6 + $0x38] sm:$0xf]
    %v187 = vld [vmem:[#allocation6 + $0x3c] sm:$0xf]
    %v188 = vld [vmem:[#allocation6 + $0x40] sm:$0xf]
    %v189 = vld [vmem:[#allocation6 + $0x44] sm:$0xf]
    %v190 = vld [vmem:[#allocation6 + $0x48] sm:$0xf]
    %v191 = vld [vmem:[#allocation6 + $0x4c] sm:$0xf]
    %v192 = vld [vmem:[#allocation6 + $0x50] sm:$0xf]
    %v193 = vld [vmem:[#allocation6 + $0x54] sm:$0xf]
    %v194 = vld [vmem:[#allocation6 + $0x58] sm:$0xf]
    %v195 = vld [vmem:[#allocation6 + $0x5c] sm:$0xf]
    %v196 = vld [vmem:[#allocation6 + $0x60] sm:$0xf]
    %v197 = vld [vmem:[#allocation6 + $0x64] sm:$0xf]
    %v198 = vld [vmem:[#allocation6 + $0x68] sm:$0xf]
    %v199 = vld [vmem:[#allocation6 + $0x6c] sm:$0xf]
    %v200 = vld [vmem:[#allocation6 + $0x70] sm:$0xf]
    %v201 = vld [vmem:[#allocation6 + $0x74] sm:$0xf]
    %v202 = vld [vmem:[#allocation6 + $0x78] sm:$0xf]
    %v203 = vld [vmem:[#allocation6 + $0x7c] sm:$0xf]
    %v204 = vld [vmem:[#allocation6 + $0x80] sm:$0xf]
    %v205 = vld [vmem:[#allocation6 + $0x84] sm:$0xf]
    %v206 = vld [vmem:[#allocation6 + $0x88] sm:$0xf]
    %v207 = vld [vmem:[#allocation6 + $0x8c] sm:$0xf]
    %v208 = vld [vmem:[#allocation6 + $0x90] sm:$0xf]
    %v209 = vld [vmem:[#allocation6 + $0x94] sm:$0xf]
    %v210 = vld [vmem:[#allocation6 + $0x98] sm:$0xf]
    %v211 = vld [vmem:[#allocation6 + $0x9c] sm:$0xf]
    %v212 = vld [vmem:[#allocation6 + $0xa0] sm:$0xf]
    %v213 = vld [vmem:[#allocation6 + $0xa4] sm:$0xf]
    %v214 = vld [vmem:[#allocation6 + $0xa8] sm:$0xf]
    %v215 = vld [vmem:[#allocation6 + $0xac] sm:$0xf]
    %v216 = vld [vmem:[#allocation6 + $0xb0] sm:$0xf]
    %v217 = vld [vmem:[#allocation6 + $0xb4] sm:$0xf]
    %v218 = vld [vmem:[#allocation6 + $0xb8] sm:$0xf]
    %v219 = vld [vmem:[#allocation6 + $0xbc] sm:$0xf]
    %v220 = vld [vmem:[#allocation6 + $0xc0] sm:$0xf]
    %v221 = vld [vmem:[#allocation6 + $0xc4] sm:$0xf]
    %v222 = vld [vmem:[#allocation6 + $0xc8] sm:$0xf]
    %v223 = vld [vmem:[#allocation6 + $0xcc] sm:$0xf]
    %v224 = vld [vmem:[#allocation6 + $0xd0] sm:$0xf]
    %v225 = vld [vmem:[#allocation6 + $0xd4] sm:$0xf]
    %v226 = vld [vmem:[#allocation6 + $0xd8] sm:$0xf]
    %v227 = vld [vmem:[#allocation6 + $0xdc] sm:$0xf]
    %v228 = vld [vmem:[#allocation6 + $0xe0] sm:$0xf]
    %v229 = vld [vmem:[#allocation6 + $0xe4] sm:$0xf]
    %v230 = vld [vmem:[#allocation6 + $0xe8] sm:$0xf]
    %v231 = vld [vmem:[#allocation6 + $0xec] sm:$0xf]
    %v232 = vld [vmem:[#allocation6 + $0xf0] sm:$0xf]
    %v233 = vld [vmem:[#allocation6 + $0xf4] sm:$0xf]
    %v234 = vld [vmem:[#allocation6 + $0xf8] sm:$0xf]
    %v235 = vld [vmem:[#allocation6 + $0xfc] sm:$0xf]
    %v236 = vld [vmem:[#allocation6 + $0x100] sm:$0xf]
    %v237 = vld [vmem:[#allocation6 + $0x104] sm:$0xf]
    %v238 = vld [vmem:[#allocation6 + $0x108] sm:$0xf]
    %v239 = vld [vmem:[#allocation6 + $0x10c] sm:$0xf]
    %v240 = vld [vmem:[#allocation6 + $0x110] sm:$0xf]
    %v241 = vld [vmem:[#allocation6 + $0x114] sm:$0xf]
    %v242 = vld [vmem:[#allocation6 + $0x118] sm:$0xf]
    %v243 = vld [vmem:[#allocation6 + $0x11c] sm:$0xf]
    %v244 = vld [vmem:[#allocation6 + $0x120] sm:$0xf]
    %v245 = vld [vmem:[#allocation6 + $0x124] sm:$0xf]
    %v246 = vld [vmem:[#allocation6 + $0x128] sm:$0xf]
    %v247 = vld [vmem:[#allocation6 + $0x12c] sm:$0xf]
    %v248 = vld [vmem:[#allocation6 + $0x130] sm:$0xf]
    %v249 = vld [vmem:[#allocation6 + $0x134] sm:$0xf]
    %v250 = vld [vmem:[#allocation6 + $0x138] sm:$0xf]
    %v251 = vld [vmem:[#allocation6 + $0x13c] sm:$0xf]
    %v252 = vld [vmem:[#allocation6 + $0x140] sm:$0xf]
    %v253 = vld [vmem:[#allocation6 + $0x144] sm:$0xf]
    %v254 = vld [vmem:[#allocation6 + $0x148] sm:$0xf]
    %v255 = vld [vmem:[#allocation6 + $0x14c] sm:$0xf]
    %v256 = vld [vmem:[#allocation6 + $0x150] sm:$0xf]
    %v257 = vld [vmem:[#allocation6 + $0x154] sm:$0xf]
    %v258 = vld [vmem:[#allocation6 + $0x158] sm:$0xf]
    %v259 = vld [vmem:[#allocation6 + $0x15c] sm:$0xf]
    %v260 = vld [vmem:[#allocation6 + $0x160] sm:$0xf]
    %v261 = vld [vmem:[#allocation6 + $0x164] sm:$0xf]
    %v262 = vld [vmem:[#allocation6 + $0x168] sm:$0xf]
    %v263 = vld [vmem:[#allocation6 + $0x16c] sm:$0xf]
    %v264 = vld [vmem:[#allocation6 + $0x170] sm:$0xf]
    %v265 = vld [vmem:[#allocation6 + $0x174] sm:$0xf]
    %v266 = vld [vmem:[#allocation6 + $0x178] sm:$0xf]
    %v267 = vld [vmem:[#allocation6 + $0x17c] sm:$0xf]
    %v268 = vld [vmem:[#allocation6 + $0x180] sm:$0xf]
    %v269 = vld [vmem:[#allocation6 + $0x184] sm:$0xf]
    %v270 = vld [vmem:[#allocation6 + $0x188] sm:$0xf]
    %v271 = vld [vmem:[#allocation6 + $0x18c] sm:$0xf]
    %v272 = vld [vmem:[#allocation6 + $0x190] sm:$0xf]
    %v273 = vld [vmem:[#allocation6 + $0x194] sm:$0xf]
    %v274 = vld [vmem:[#allocation6 + $0x198] sm:$0xf]
    %v275 = vld [vmem:[#allocation6 + $0x19c] sm:$0xf]
    %v276 = vld [vmem:[#allocation6 + $0x1a0] sm:$0xf]
    %v277 = vld [vmem:[#allocation6 + $0x1a4] sm:$0xf]
    %v278 = vld [vmem:[#allocation6 + $0x1a8] sm:$0xf]
    %v279 = vld [vmem:[#allocation6 + $0x1ac] sm:$0xf]
    %v280 = vld [vmem:[#allocation6 + $0x1b0] sm:$0xf]
    %v281 = vld [vmem:[#allocation6 + $0x1b4] sm:$0xf]
    %v282 = vld [vmem:[#allocation6 + $0x1b8] sm:$0xf]
    %v283 = vld [vmem:[#allocation6 + $0x1bc] sm:$0xf]
    %v284 = vld [vmem:[#allocation6 + $0x1c0] sm:$0xf]
    %v285 = vld [vmem:[#allocation6 + $0x1c4] sm:$0xf]
    %v286 = vld [vmem:[#allocation6 + $0x1c8] sm:$0xf]
    %v287 = vld [vmem:[#allocation6 + $0x1cc] sm:$0xf]
    %v288 = vld [vmem:[#allocation6 + $0x1d0] sm:$0xf]
    %v289 = vld [vmem:[#allocation6 + $0x1d4] sm:$0xf]
    %v290 = vld [vmem:[#allocation6 + $0x1d8] sm:$0xf]
    %v291 = vld [vmem:[#allocation6 + $0x1dc] sm:$0xf]
    %v292 = vld [vmem:[#allocation6 + $0x1e0] sm:$0xf]
    %v293 = vld [vmem:[#allocation6 + $0x1e4] sm:$0xf]
    %v294 = vld [vmem:[#allocation6 + $0x1e8] sm:$0xf]
    %v295 = vld [vmem:[#allocation6 + $0x1ec] sm:$0xf]
    %v296 = vld [vmem:[#allocation6 + $0x1f0] sm:$0xf]
    %v297 = vld [vmem:[#allocation6 + $0x1f4] sm:$0xf]
    %v298 = vld [vmem:[#allocation6 + $0x1f8] sm:$0xf]
    %v299 = vld [vmem:[#allocation6 + $0x1fc] sm:$0xf]
    %v300 = vld [vmem:[#allocation2] sm:$0xff]
    %v429 = vunpack.c.l.b16 %v172
    %v430 = vunpack.c.l.b16 %v173
    %v431 = vunpack.c.l.b16 %v174
    %v432 = vunpack.c.l.b16 %v175
    %v433 = vunpack.c.l.b16 %v176
    %v434 = vunpack.c.l.b16 %v177
    %v435 = vunpack.c.l.b16 %v178
    %v436 = vunpack.c.l.b16 %v179
    %v437 = vunpack.c.l.b16 %v180
    %v438 = vunpack.c.l.b16 %v181
    %v439 = vunpack.c.l.b16 %v182
    %v440 = vunpack.c.l.b16 %v183
    %v441 = vunpack.c.l.b16 %v184
    %v442 = vunpack.c.l.b16 %v185
    %v443 = vunpack.c.l.b16 %v186
    %v444 = vunpack.c.l.b16 %v187
    %v445 = vunpack.c.l.b16 %v188
    %v446 = vunpack.c.l.b16 %v189
    %v447 = vunpack.c.l.b16 %v190
    %v448 = vunpack.c.l.b16 %v191
    %v449 = vunpack.c.l.b16 %v192
    %v450 = vunpack.c.l.b16 %v193
    %v451 = vunpack.c.l.b16 %v194
    %v452 = vunpack.c.l.b16 %v195
    %v453 = vunpack.c.l.b16 %v196
    %v454 = vunpack.c.l.b16 %v197
    %v455 = vunpack.c.l.b16 %v198
    %v456 = vunpack.c.l.b16 %v199
    %v457 = vunpack.c.l.b16 %v200
    %v458 = vunpack.c.l.b16 %v201
    %v459 = vunpack.c.l.b16 %v202
    %v460 = vunpack.c.l.b16 %v203
    %v461 = vunpack.c.l.b16 %v204
    %v462 = vunpack.c.l.b16 %v205
    %v463 = vunpack.c.l.b16 %v206
    %v464 = vunpack.c.l.b16 %v207
    %v465 = vunpack.c.l.b16 %v208
    %v466 = vunpack.c.l.b16 %v209
    %v467 = vunpack.c.l.b16 %v210
    %v468 = vunpack.c.l.b16 %v211
    %v469 = vunpack.c.l.b16 %v212
    %v470 = vunpack.c.l.b16 %v213
    %v471 = vunpack.c.l.b16 %v214
    %v472 = vunpack.c.l.b16 %v215
    %v473 = vunpack.c.l.b16 %v216
    %v474 = vunpack.c.l.b16 %v217
    %v475 = vunpack.c.l.b16 %v218
    %v476 = vunpack.c.l.b16 %v219
    %v477 = vunpack.c.l.b16 %v220
    %v478 = vunpack.c.l.b16 %v221
    %v479 = vunpack.c.l.b16 %v222
    %v480 = vunpack.c.l.b16 %v223
    %v481 = vunpack.c.l.b16 %v224
    %v482 = vunpack.c.l.b16 %v225
    %v483 = vunpack.c.l.b16 %v226
    %v484 = vunpack.c.l.b16 %v227
    %v485 = vunpack.c.l.b16 %v228
    %v486 = vunpack.c.l.b16 %v229
    %v487 = vunpack.c.l.b16 %v230
    %v488 = vunpack.c.l.b16 %v231
    %v489 = vunpack.c.l.b16 %v232
    %v490 = vunpack.c.l.b16 %v233
    %v491 = vunpack.c.l.b16 %v234
    %v492 = vunpack.c.l.b16 %v235
    %v493 = vunpack.c.l.b16 %v236
    %v494 = vunpack.c.l.b16 %v237
    %v495 = vunpack.c.l.b16 %v238
    %v496 = vunpack.c.l.b16 %v239
    %v497 = vunpack.c.l.b16 %v240
    %v498 = vunpack.c.l.b16 %v241
    %v499 = vunpack.c.l.b16 %v242
    %v500 = vunpack.c.l.b16 %v243
    %v501 = vunpack.c.l.b16 %v244
    %v502 = vunpack.c.l.b16 %v245
    %v503 = vunpack.c.l.b16 %v246
    %v504 = vunpack.c.l.b16 %v247
    %v505 = vunpack.c.l.b16 %v248
    %v506 = vunpack.c.l.b16 %v249
    %v507 = vunpack.c.l.b16 %v250
    %v508 = vunpack.c.l.b16 %v251
    %v509 = vunpack.c.l.b16 %v252
    %v510 = vunpack.c.l.b16 %v253
    %v511 = vunpack.c.l.b16 %v254
    %v512 = vunpack.c.l.b16 %v255
    %v513 = vunpack.c.l.b16 %v256
    %v514 = vunpack.c.l.b16 %v257
    %v515 = vunpack.c.l.b16 %v258
    %v516 = vunpack.c.l.b16 %v259
    %v517 = vunpack.c.l.b16 %v260
    %v518 = vunpack.c.l.b16 %v261
    %v519 = vunpack.c.l.b16 %v262
    %v520 = vunpack.c.l.b16 %v263
    %v521 = vunpack.c.l.b16 %v264
    %v522 = vunpack.c.l.b16 %v265
    %v523 = vunpack.c.l.b16 %v266
    %v524 = vunpack.c.l.b16 %v267
    %v525 = vunpack.c.l.b16 %v268
    %v526 = vunpack.c.l.b16 %v269
    %v527 = vunpack.c.l.b16 %v270
    %v528 = vunpack.c.l.b16 %v271
    %v529 = vunpack.c.l.b16 %v272
    %v530 = vunpack.c.l.b16 %v273
    %v531 = vunpack.c.l.b16 %v274
    %v532 = vunpack.c.l.b16 %v275
    %v533 = vunpack.c.l.b16 %v276
    %v534 = vunpack.c.l.b16 %v277
    %v535 = vunpack.c.l.b16 %v278
    %v536 = vunpack.c.l.b16 %v279
    %v537 = vunpack.c.l.b16 %v280
    %v538 = vunpack.c.l.b16 %v281
    %v539 = vunpack.c.l.b16 %v282
    %v540 = vunpack.c.l.b16 %v283
    %v541 = vunpack.c.l.b16 %v284
    %v542 = vunpack.c.l.b16 %v285
    %v543 = vunpack.c.l.b16 %v286
    %v544 = vunpack.c.l.b16 %v287
    %v545 = vunpack.c.l.b16 %v288
    %v546 = vunpack.c.l.b16 %v289
    %v547 = vunpack.c.l.b16 %v290
    %v548 = vunpack.c.l.b16 %v291
    %v549 = vunpack.c.l.b16 %v292
    %v550 = vunpack.c.l.b16 %v293
    %v551 = vunpack.c.l.b16 %v294
    %v552 = vunpack.c.l.b16 %v295
    %v553 = vunpack.c.l.b16 %v296
    %v554 = vunpack.c.l.b16 %v297
    %v555 = vunpack.c.l.b16 %v298
    %v556 = vunpack.c.l.b16 %v299
    %v557 = vpack.c.b16 %v430, %v429
    %v558 = vpack.c.b16 %v432, %v431
    %v559 = vpack.c.b16 %v434, %v433
    %v560 = vpack.c.b16 %v436, %v435
    %v561 = vpack.c.b16 %v438, %v437
    %v562 = vpack.c.b16 %v440, %v439
    %v563 = vpack.c.b16 %v442, %v441
    %v564 = vpack.c.b16 %v444, %v443
    %v565 = vpack.c.b16 %v446, %v445
    %v566 = vpack.c.b16 %v448, %v447
    %v567 = vpack.c.b16 %v450, %v449
    %v568 = vpack.c.b16 %v452, %v451
    %v569 = vpack.c.b16 %v454, %v453
    %v570 = vpack.c.b16 %v456, %v455
    %v571 = vpack.c.b16 %v458, %v457
    %v572 = vpack.c.b16 %v460, %v459
    %v573 = vpack.c.b16 %v462, %v461
    %v574 = vpack.c.b16 %v464, %v463
    %v575 = vpack.c.b16 %v466, %v465
    %v576 = vpack.c.b16 %v468, %v467
    %v577 = vpack.c.b16 %v470, %v469
    %v578 = vpack.c.b16 %v472, %v471
    %v579 = vpack.c.b16 %v474, %v473
    %v580 = vpack.c.b16 %v476, %v475
    %v581 = vpack.c.b16 %v478, %v477
    %v582 = vpack.c.b16 %v480, %v479
    %v583 = vpack.c.b16 %v482, %v481
    %v584 = vpack.c.b16 %v484, %v483
    %v585 = vpack.c.b16 %v486, %v485
    %v586 = vpack.c.b16 %v488, %v487
    %v587 = vpack.c.b16 %v490, %v489
    %v588 = vpack.c.b16 %v492, %v491
    %v589 = vpack.c.b16 %v494, %v493
    %v590 = vpack.c.b16 %v496, %v495
    %v591 = vpack.c.b16 %v498, %v497
    %v592 = vpack.c.b16 %v500, %v499
    %v593 = vpack.c.b16 %v502, %v501
    %v594 = vpack.c.b16 %v504, %v503
    %v595 = vpack.c.b16 %v506, %v505
    %v596 = vpack.c.b16 %v508, %v507
    %v597 = vpack.c.b16 %v510, %v509
    %v598 = vpack.c.b16 %v512, %v511
    %v599 = vpack.c.b16 %v514, %v513
    %v600 = vpack.c.b16 %v516, %v515
    %v601 = vpack.c.b16 %v518, %v517
    %v602 = vpack.c.b16 %v520, %v519
    %v603 = vpack.c.b16 %v522, %v521
    %v604 = vpack.c.b16 %v524, %v523
    %v605 = vpack.c.b16 %v526, %v525
    %v606 = vpack.c.b16 %v528, %v527
    %v607 = vpack.c.b16 %v530, %v529
    %v608 = vpack.c.b16 %v532, %v531
    %v609 = vpack.c.b16 %v534, %v533
    %v610 = vpack.c.b16 %v536, %v535
    %v611 = vpack.c.b16 %v538, %v537
    %v612 = vpack.c.b16 %v540, %v539
    %v613 = vpack.c.b16 %v542, %v541
    %v614 = vpack.c.b16 %v544, %v543
    %v615 = vpack.c.b16 %v546, %v545
    %v616 = vpack.c.b16 %v548, %v547
    %v617 = vpack.c.b16 %v550, %v549
    %v618 = vpack.c.b16 %v552, %v551
    %v619 = vpack.c.b16 %v554, %v553
    %v620 = vpack.c.b16 %v556, %v555
    %685 = vmatprep.subr.bf16.mxu0 0
    %686 = vmatpush1.bf16.msra.mxu0 %v557
    %687 = vmatprep.subr.bf16.mxu0 0
    %688 = vmatpush1.bf16.msra.mxu0 %v558
    %689 = vmatprep.subr.bf16.mxu0 0
    %690 = vmatpush1.bf16.msra.mxu0 %v559
    %691 = vmatprep.subr.bf16.mxu0 0
    %692 = vmatpush1.bf16.msra.mxu0 %v560
    %693 = vmatprep.subr.bf16.mxu0 0
    %694 = vmatpush1.bf16.msra.mxu0 %v561
    %695 = vmatprep.subr.bf16.mxu0 0
    %696 = vmatpush1.bf16.msra.mxu0 %v562
    %697 = vmatprep.subr.bf16.mxu0 0
    %698 = vmatpush1.bf16.msra.mxu0 %v563
    %699 = vmatprep.subr.bf16.mxu0 0
    %700 = vmatpush1.bf16.msra.mxu0 %v564
    %701 = vmatprep.subr.bf16.mxu0 0
    %702 = vmatpush1.bf16.msra.mxu0 %v565
    %703 = vmatprep.subr.bf16.mxu0 0
    %704 = vmatpush1.bf16.msra.mxu0 %v566
    %705 = vmatprep.subr.bf16.mxu0 0
    %706 = vmatpush1.bf16.msra.mxu0 %v567
    %707 = vmatprep.subr.bf16.mxu0 0
    %708 = vmatpush1.bf16.msra.mxu0 %v568
    %709 = vmatprep.subr.bf16.mxu0 0
    %710 = vmatpush1.bf16.msra.mxu0 %v569
    %711 = vmatprep.subr.bf16.mxu0 0
    %712 = vmatpush1.bf16.msra.mxu0 %v570
    %713 = vmatprep.subr.bf16.mxu0 0
    %714 = vmatpush1.bf16.msra.mxu0 %v571
    %715 = vmatprep.subr.bf16.mxu0 0
    %716 = vmatpush1.bf16.msra.mxu0 %v572
    %717 = vmatprep.mubr.bf16.mxu0 %v165
    %718 = vmatmul.mubr.bf16.gmra.mrb[0].mxu0 %v164
    %v719 = vpop.f32.mrb[0].mxu0
    %v720 = vadd.f32 0.0, %v719
    %v721 = vpop.f32.mrb[0].mxu0
    %v722 = vpop.f32.mrb[0].mxu0
    %v723 = vpop.f32.mrb[0].mxu0
    %724 = vdwg.mxu0
    %725 = vmatprep.subr.bf16.mxu0 0
    %726 = vmatpush1.bf16.msra.mxu0 %v573
    %727 = vmatprep.subr.bf16.mxu0 0
    %728 = vmatpush1.bf16.msra.mxu0 %v574
    %729 = vmatprep.subr.bf16.mxu0 0
    %730 = vmatpush1.bf16.msra.mxu0 %v575
    %731 = vmatprep.subr.bf16.mxu0 0
    %732 = vmatpush1.bf16.msra.mxu0 %v576
    %733 = vmatprep.subr.bf16.mxu0 0
    %734 = vmatpush1.bf16.msra.mxu0 %v577
    %735 = vmatprep.subr.bf16.mxu0 0
    %736 = vmatpush1.bf16.msra.mxu0 %v578
    %737 = vmatprep.subr.bf16.mxu0 0
    %738 = vmatpush1.bf16.msra.mxu0 %v579
    %739 = vmatprep.subr.bf16.mxu0 0
    %740 = vmatpush1.bf16.msra.mxu0 %v580
    %741 = vmatprep.subr.bf16.mxu0 0
    %742 = vmatpush1.bf16.msra.mxu0 %v581
    %743 = vmatprep.subr.bf16.mxu0 0
    %744 = vmatpush1.bf16.msra.mxu0 %v582
    %745 = vmatprep.subr.bf16.mxu0 0
    %746 = vmatpush1.bf16.msra.mxu0 %v583
    %747 = vmatprep.subr.bf16.mxu0 0
    %748 = vmatpush1.bf16.msra.mxu0 %v584
    %749 = vmatprep.subr.bf16.mxu0 0
    %750 = vmatpush1.bf16.msra.mxu0 %v585
    %751 = vmatprep.subr.bf16.mxu0 0
    %752 = vmatpush1.bf16.msra.mxu0 %v586
    %753 = vmatprep.subr.bf16.mxu0 0
    %754 = vmatpush1.bf16.msra.mxu0 %v587
    %755 = vmatprep.subr.bf16.mxu0 0
    %756 = vmatpush1.bf16.msra.mxu0 %v588
    %757 = vmatprep.mubr.bf16.mxu0 %v167
    %758 = vmatmul.mubr.bf16.gmra.mrb[0].mxu0 %v166
    %v759 = vpop.f32.mrb[0].mxu0
    %v760 = vadd.f32 %v720, %v759
    %v761 = vpop.f32.mrb[0].mxu0
    %v762 = vpop.f32.mrb[0].mxu0
    %v763 = vpop.f32.mrb[0].mxu0
    %764 = vdwg.mxu0
    %765 = vmatprep.subr.bf16.mxu0 0
    %766 = vmatpush1.bf16.msra.mxu0 %v589
    %767 = vmatprep.subr.bf16.mxu0 0
    %768 = vmatpush1.bf16.msra.mxu0 %v590
    %769 = vmatprep.subr.bf16.mxu0 0
    %770 = vmatpush1.bf16.msra.mxu0 %v591
    %771 = vmatprep.subr.bf16.mxu0 0
    %772 = vmatpush1.bf16.msra.mxu0 %v592
    %773 = vmatprep.subr.bf16.mxu0 0
    %774 = vmatpush1.bf16.msra.mxu0 %v593
    %775 = vmatprep.subr.bf16.mxu0 0
    %776 = vmatpush1.bf16.msra.mxu0 %v594
    %777 = vmatprep.subr.bf16.mxu0 0
    %778 = vmatpush1.bf16.msra.mxu0 %v595
    %779 = vmatprep.subr.bf16.mxu0 0
    %780 = vmatpush1.bf16.msra.mxu0 %v596
    %781 = vmatprep.subr.bf16.mxu0 0
    %782 = vmatpush1.bf16.msra.mxu0 %v597
    %783 = vmatprep.subr.bf16.mxu0 0
    %784 = vmatpush1.bf16.msra.mxu0 %v598
    %785 = vmatprep.subr.bf16.mxu0 0
    %786 = vmatpush1.bf16.msra.mxu0 %v599
    %787 = vmatprep.subr.bf16.mxu0 0
    %788 = vmatpush1.bf16.msra.mxu0 %v600
    %789 = vmatprep.subr.bf16.mxu0 0
    %790 = vmatpush1.bf16.msra.mxu0 %v601
    %791 = vmatprep.subr.bf16.mxu0 0
    %792 = vmatpush1.bf16.msra.mxu0 %v602
    %793 = vmatprep.subr.bf16.mxu0 0
    %794 = vmatpush1.bf16.msra.mxu0 %v603
    %795 = vmatprep.subr.bf16.mxu0 0
    %796 = vmatpush1.bf16.msra.mxu0 %v604
    %797 = vmatprep.mubr.bf16.mxu0 %v169
    %798 = vmatmul.mubr.bf16.gmra.mrb[0].mxu0 %v168
    %v799 = vpop.f32.mrb[0].mxu0
    %v800 = vadd.f32 %v760, %v799
    %v801 = vpop.f32.mrb[0].mxu0
    %v802 = vpop.f32.mrb[0].mxu0
    %v803 = vpop.f32.mrb[0].mxu0
    %804 = vdwg.mxu0
    %805 = vmatprep.subr.bf16.mxu0 0
    %806 = vmatpush1.bf16.msra.mxu0 %v605
    %807 = vmatprep.subr.bf16.mxu0 0
    %808 = vmatpush1.bf16.msra.mxu0 %v606
    %809 = vmatprep.subr.bf16.mxu0 0
    %810 = vmatpush1.bf16.msra.mxu0 %v607
    %811 = vmatprep.subr.bf16.mxu0 0
    %812 = vmatpush1.bf16.msra.mxu0 %v608
    %813 = vmatprep.subr.bf16.mxu0 0
    %814 = vmatpush1.bf16.msra.mxu0 %v609
    %815 = vmatprep.subr.bf16.mxu0 0
    %816 = vmatpush1.bf16.msra.mxu0 %v610
    %817 = vmatprep.subr.bf16.mxu0 0
    %818 = vmatpush1.bf16.msra.mxu0 %v611
    %819 = vmatprep.subr.bf16.mxu0 0
    %820 = vmatpush1.bf16.msra.mxu0 %v612
    %821 = vmatprep.subr.bf16.mxu0 0
    %822 = vmatpush1.bf16.msra.mxu0 %v613
    %823 = vmatprep.subr.bf16.mxu0 0
    %824 = vmatpush1.bf16.msra.mxu0 %v614
    %825 = vmatprep.subr.bf16.mxu0 0
    %826 = vmatpush1.bf16.msra.mxu0 %v615
    %827 = vmatprep.subr.bf16.mxu0 0
    %828 = vmatpush1.bf16.msra.mxu0 %v616
    %829 = vmatprep.subr.bf16.mxu0 0
    %830 = vmatpush1.bf16.msra.mxu0 %v617
    %831 = vmatprep.subr.bf16.mxu0 0
    %832 = vmatpush1.bf16.msra.mxu0 %v618
    %833 = vmatprep.subr.bf16.mxu0 0
    %834 = vmatpush1.bf16.msra.mxu0 %v619
    %835 = vmatprep.subr.bf16.mxu0 0
    %836 = vmatpush1.bf16.msra.mxu0 %v620
    %837 = vmatprep.mubr.bf16.mxu0 %v171
    %838 = vmatmul.mubr.bf16.gmra.mrb[0].mxu0 %v170
    %v839 = vpop.f32.mrb[0].mxu0
    %v840 = vadd.f32 %v800, %v839
    %v841 = vpop.f32.mrb[0].mxu0
    %v842 = vpop.f32.mrb[0].mxu0
    %v843 = vpop.f32.mrb[0].mxu0
    %844 = vdwg.mxu0
    %v845 = vadd.f32 %v300, %v840
    %846 = vst [vmem:[#allocation2] sm:$0xff] %v845
    // Predicated region
    $region38: #{tpu_custom_call.1} parent=1 // pred_check
      %p847 = pneg %p63
    $region39: #{tpu_custom_call.1} parent=1 // pred_check_branch
      %849 = sbr.rel (%p847) target = $region41
    $region40: #{tpu_custom_call.1} parent=1 // pred_region
      %v850 = vld [vmem:[#allocation2] sm:$0xff]
      %v851 = vld [vmem:[%s2] sm:$0x1]
      %v853 = vlaneseq
      %v854 = vshrl.u32 %v853, 7
      %v855 = vsub.s32 0, %v854
      %v856 = vrot.slane %v851, %v855
      %v858 = vadd.f32 %v850, %v856
      %v859 = vmax.f32 %v858, 0.0
      %v860 = vpack.c.bf16 %v859, %v859
      %v861 = vld [vmem:[#allocation8] sm:$0xf]
      %v862 = vld [vmem:[#allocation8 + $0x4] sm:$0xf]
      %v863 = vld [vmem:[#allocation8 + $0x8] sm:$0xf]
      %v864 = vld [vmem:[#allocation8 + $0xc] sm:$0xf]
      %v865 = vld [vmem:[#allocation8 + $0x10] sm:$0xf]
      %v866 = vld [vmem:[#allocation8 + $0x14] sm:$0xf]
      %v867 = vld [vmem:[#allocation8 + $0x18] sm:$0xf]
      %v868 = vld [vmem:[#allocation8 + $0x1c] sm:$0xf]
      %v869 = vld [vmem:[#allocation8 + $0x20] sm:$0xf]
      %v870 = vld [vmem:[#allocation8 + $0x24] sm:$0xf]
      %v871 = vld [vmem:[#allocation8 + $0x28] sm:$0xf]
      %v872 = vld [vmem:[#allocation8 + $0x2c] sm:$0xf]
      %v873 = vld [vmem:[#allocation8 + $0x30] sm:$0xf]
      %v874 = vld [vmem:[#allocation8 + $0x34] sm:$0xf]
      %v875 = vld [vmem:[#allocation8 + $0x38] sm:$0xf]
      %v876 = vld [vmem:[#allocation8 + $0x3c] sm:$0xf]
      %v877 = vld [vmem:[%s4] sm:$0x1]
      %v879 = vlaneseq
      %v880 = vshrl.u32 %v879, 7
      %v881 = vsub.s32 0, %v880
      %v882 = vrot.slane %v877, %v881
      %v900 = vunpack.c.l.b16 %v861
      %v901 = vunpack.c.l.b16 %v862
      %v902 = vunpack.c.l.b16 %v863
      %v903 = vunpack.c.l.b16 %v864
      %v904 = vunpack.c.l.b16 %v865
      %v905 = vunpack.c.l.b16 %v866
      %v906 = vunpack.c.l.b16 %v867
      %v907 = vunpack.c.l.b16 %v868
      %v908 = vunpack.c.l.b16 %v869
      %v909 = vunpack.c.l.b16 %v870
      %v910 = vunpack.c.l.b16 %v871
      %v911 = vunpack.c.l.b16 %v872
      %v912 = vunpack.c.l.b16 %v873
      %v913 = vunpack.c.l.b16 %v874
      %v914 = vunpack.c.l.b16 %v875
      %v915 = vunpack.c.l.b16 %v876
      %v916 = vpack.c.b16 %v901, %v900
      %v917 = vpack.c.b16 %v903, %v902
      %v918 = vpack.c.b16 %v905, %v904
      %v919 = vpack.c.b16 %v907, %v906
      %v920 = vpack.c.b16 %v909, %v908
      %v921 = vpack.c.b16 %v911, %v910
      %v922 = vpack.c.b16 %v913, %v912
      %v923 = vpack.c.b16 %v915, %v914
      %932 = vmatprep.subr.bf16.mxu0 0
      %933 = vmatpush1.bf16.msra.mxu0 %v916
      %934 = vmatprep.subr.bf16.mxu0 0
      %935 = vmatpush1.bf16.msra.mxu0 %v917
      %936 = vmatprep.subr.bf16.mxu0 0
      %937 = vmatpush1.bf16.msra.mxu0 %v918
      %938 = vmatprep.subr.bf16.mxu0 0
      %939 = vmatpush1.bf16.msra.mxu0 %v919
      %940 = vmatprep.subr.bf16.mxu0 0
      %941 = vmatpush1.bf16.msra.mxu0 %v920
      %942 = vmatprep.subr.bf16.mxu0 0
      %943 = vmatpush1.bf16.msra.mxu0 %v921
      %944 = vmatprep.subr.bf16.mxu0 0
      %945 = vmatpush1.bf16.msra.mxu0 %v922
      %946 = vmatprep.subr.bf16.mxu0 0
      %947 = vmatpush1.bf16.msra.mxu0 %v923
      %948 = vmatprep.subr.bf16.mxu0 0
      %949 = vmatpush1.bf16.msra.mxu0 0
      %950 = vmatprep.subr.bf16.mxu0 0
      %951 = vmatpush1.bf16.msra.mxu0 0
      %952 = vmatprep.subr.bf16.mxu0 0
      %953 = vmatpush1.bf16.msra.mxu0 0
      %954 = vmatprep.subr.bf16.mxu0 0
      %955 = vmatpush1.bf16.msra.mxu0 0
      %956 = vmatprep.subr.bf16.mxu0 0
      %957 = vmatpush1.bf16.msra.mxu0 0
      %958 = vmatprep.subr.bf16.mxu0 0
      %959 = vmatpush1.bf16.msra.mxu0 0
      %960 = vmatprep.subr.bf16.mxu0 0
      %961 = vmatpush1.bf16.msra.mxu0 0
      %962 = vmatprep.subr.bf16.mxu0 0
      %963 = vmatpush1.bf16.msra.mxu0 0
      %964 = vmatprep.mubr.bf16.mxu0 0
      %965 = vmatmul.mubr.bf16.gmra.mrb[0].mxu0 %v860
      %v966 = vpop.f32.mrb[0].mxu0
      %v967 = vadd.f32 %v882, %v966
      %v968 = vpop.f32.mrb[0].mxu0
      %v969 = vpop.f32.mrb[0].mxu0
      %v970 = vpop.f32.mrb[0].mxu0
      %971 = vdwg.mxu0
      %972 = vst [vmem:[#allocation9] sm:$0xff] %v967
    $region41: #{tpu_custom_call.1} parent=1 // pred_fallthru
      _
    // Predicated region
    $region42: #{tpu_custom_call.1} parent=1 // pred_check
      _
    $region43: #{tpu_custom_call.1} parent=1 // pred_check_branch
      %974 = sbr.rel (0) target = $region45
    $region44: #{tpu_custom_call.1} parent=1 // pred_region
      %s976 = ssub.s32 128, 128
      %977 = vsyncadd [#allocation5], %s976
      %s979 = sshll.u32 [#allocation9], 4
      %s980 = int_to_ptr.vmem [resolvable:$true] %s979
      %982 = dma.vmem_to_hbm [thread:$0]  %s980, 128, %s5, [#allocation5]
    $region45: #{tpu_custom_call.1} parent=1 // pred_fallthru
      _
    // Predicated region
    $region46: #{tpu_custom_call.1} parent=1 // pred_check
      _
    $region47: #{tpu_custom_call.1} parent=1 // pred_check_branch
      %984 = sbr.rel (0) target = $region49
    $region48: #{tpu_custom_call.1} parent=1 // pred_region
      %985 = dma.done [#allocation5], 128
    $region49: #{tpu_custom_call.1} parent=1 // pred_fallthru
      _
    %986 = vsyncpa [#allocation4], 1
    %987 = vsyncpa [#allocation7], 1
    %988 = vsyncpa [#allocation5], 1

</llo_original>
